<compile_context>
chip_gen: v7x
topology: tpu7x:2x2x1
jax: 0.10.0
libtpu: 0.0.40
codegen_flags: <defaults>
</compile_context>

<pallas_src>
import jax
import jax.numpy as jnp
from jax.experimental import pallas as pl
from jax.experimental.pallas import tpu as pltpu


# ----------------------------------------------------------------------------
# Kernels
# ----------------------------------------------------------------------------
def _make_small_c_kernel(C):
    """VPU-only path for tiny channel counts (skip the MXU entirely).

    w_ref: SMEM (C, C) f32 scalars; x_ref/o_ref: VMEM (Nt, C, thw) tiles.
    z[:, o, :] = sum_c w[o, c] * x[:, c, :]  via C*C scalar-broadcast FMAs.
    Each output row is stored directly -> no concatenate / sublane re-pack.
    """
    def kernel(w_ref, x_ref, o_ref):
        x = x_ref[...]                                    # (Nt, C, thw), native dtype
        for o in range(C):                                # static unroll (C tiny)
            z = w_ref[o, 0] * x[:, 0:1, :].astype(jnp.float32)
            for c in range(1, C):
                z = z + w_ref[o, c] * x[:, c:c + 1, :].astype(jnp.float32)
            gate = jax.nn.sigmoid(z)                      # (Nt, 1, thw) f32, EUP
            o_ref[:, o:o + 1, :] = (gate * x[:, o:o + 1, :]).astype(o_ref.dtype)
    return kernel


def _mxu_kernel(w_ref, x_ref, o_ref):
    """MXU path for larger C.  w_ref: (C, C); x_ref/o_ref: (Nt, C, thw)."""
    w = w_ref[...]
    nt = x_ref.shape[0]

    def do_one(n):
        x = x_ref[n]                                      # (C, thw)
        # z = W @ X  (f32 accumulation); weight is LHS so no transpose needed.
        z = jnp.dot(w, x, preferred_element_type=jnp.float32)
        # Gate multiply in the activation dtype (bf16 VALU on v6e/v7x).
        gate = jax.nn.sigmoid(z).astype(x.dtype)
        o_ref[n] = (gate * x).astype(o_ref.dtype)

    if nt == 1:
        do_one(0)
    else:
        def body(n, carry):
            do_one(n)
            return carry
        jax.lax.fori_loop(0, nt, body, 0, unroll=True if nt <= 4 else False)


# ----------------------------------------------------------------------------
# Wrapper
# ----------------------------------------------------------------------------
def _largest_divisor_leq(n, cap):
    cap = max(1, min(n, int(cap)))
    for d in range(cap, 0, -1):
        if n % d == 0:
            return d
    return 1


def asym_swiglu_pallas(x_nchw, weight, *,
                       target_tile_bytes=2 << 20,   # ~2 MiB per input tile (raise to 4 MiB on v7x)
                       full_lane_cap_bytes=4 << 20,
                       small_c_threshold=8):
    """x_nchw: (N, C, H, W); weight: (Cout, Cin, 1, 1) with Cout == Cin == C."""
    N, C, H, W = x_nchw.shape
    HW = H * W
    dtype = x_nchw.dtype
    itemsize = jnp.dtype(dtype).itemsize

    LANE = 128
    sub_mult = 8 * max(1, 4 // itemsize)          # f32 -> 8, bf16 -> 16, int8 -> 32
    c_pad = -(-C // sub_mult) * sub_mult          # sublane-padded channel count

    # --- spatial (lane) tiling: avoid jnp.pad / slice whenever possible -----
    def _pick_thw(hw_aligned):
        max_lanes = max(LANE,
                        (target_tile_bytes // max(1, c_pad * itemsize)) // LANE * LANE)
        m = hw_aligned // LANE
        d = _largest_divisor_leq(m, max_lanes // LANE)
        return LANE * d

    if HW % LANE == 0:
        hw_pad = HW
        thw = _pick_thw(hw_pad)
        needs_pad = False
    elif c_pad * HW * itemsize <= full_lane_cap_bytes:
        # Not 128-aligned but small: take the full spatial extent as one lane
        # block (block dim == full array dim is always legal) -> zero padding.
        hw_pad = HW
        thw = HW
        needs_pad = False
    else:
        hw_pad = -(-HW // LANE) * LANE            # pad only to the 128 boundary
        thw = _pick_thw(hw_pad)
        needs_pad = True

    # Free reshape (contiguous) -- channels stay where they are.
    x3 = x_nchw.reshape(N, C, HW)
    if needs_pad:
        x3 = jnp.pad(x3, ((0, 0), (0, 0), (0, hw_pad - HW)))

    # --- batch blocking to hit the per-step DMA target ----------------------
    lanes_vmem = -(-thw // LANE) * LANE
    per_n_bytes = c_pad * lanes_vmem * itemsize   # VMEM footprint of one batch slab
    nt_cap = max(1, target_tile_bytes // max(1, per_n_bytes))
    Nt = _largest_divisor_leq(N, nt_cap)
    # Keep at least 2 grid steps when the batch allows it (pipelining /
    # v7x megacore sharding of the "parallel" axes).
    if Nt > 1 and (N // Nt) * (hw_pad // thw) < 2:
        Nt = _largest_divisor_leq(N, max(1, N // 2))

    grid = (N // Nt, hw_pad // thw)

    # --- kernel / weight dispatch -------------------------------------------
    w2d = weight.reshape(weight.shape[0], weight.shape[1])   # (C, C)
    small_c = C <= small_c_threshold
    if small_c:
        # Tiny weight lives in SMEM; scalars drive VPU broadcast-FMAs.
        w_arg = w2d.astype(jnp.float32)
        w_spec = pl.BlockSpec(memory_space=pltpu.MemorySpace.SMEM)
        kernel = _make_small_c_kernel(C)
        w_vmem_bytes = 0
    else:
        # Keep weight in the activation dtype (bf16 stays bf16 on the MXU).
        # Note: this is a deliberate (tiny) numerical deviation from the f32
        # reference weights when activations are bf16 -- fine for a sigmoid gate.
        w_arg = w2d.astype(dtype)
        w_spec = pl.BlockSpec((C, C), lambda n, j: (0, 0))
        kernel = _mxu_kernel
        w_lane_pad = -(-C // LANE) * LANE
        w_vmem_bytes = c_pad * w_lane_pad * jnp.dtype(w_arg.dtype).itemsize

    x_spec = pl.BlockSpec((Nt, C, thw), lambda n, j: (n, 0, j))
    o_spec = pl.BlockSpec((Nt, C, thw), lambda n, j: (n, 0, j))

    # --- VMEM budget: actual double-buffered need (in + out + weight) -------
    tile_vmem = Nt * per_n_bytes
    vmem_need = 2 * (tile_vmem + tile_vmem) + 2 * w_vmem_bytes
    vmem_limit = int(min(max(int(vmem_need * 1.25), 8 << 20), 48 << 20))
    vmem_limit = max(vmem_limit, int(vmem_need))  # never below the real need

    out3 = pl.pallas_call(
        kernel,
        out_shape=jax.ShapeDtypeStruct((N, C, hw_pad), dtype),
        grid_spec=pltpu.PrefetchScalarGridSpec(
            num_scalar_prefetch=0,
            grid=grid,
            in_specs=[w_spec, x_spec],
            out_specs=o_spec,
        ),
        compiler_params=pltpu.CompilerParams(
            dimension_semantics=("parallel", "parallel"),
            vmem_limit_bytes=vmem_limit,
        ),
    )(w_arg, x3)

    if needs_pad:
        out3 = out3[:, :, :HW]
    return out3.reshape(N, C, H, W)


# ----------------------------------------------------------------------------
# Weight init + pure-JAX reference
# ----------------------------------------------------------------------------
def make_weight(key, out_channels, std=1.0):
    # Mirrors: C = randn(out, out, 1, 1) / sqrt(out) * std
    # (torch.Generator(hash(str(mask_num))) seeding is replaced by a JAX key.)
    w = jax.random.normal(key, (out_channels, out_channels, 1, 1), dtype=jnp.float32)
    w = w / (out_channels ** 0.5)
    return w * std


def _reference(x_nchw, weight):
    # Pure-JAX reference of the PyTorch forward (1x1 conv + sigmoid gate).
    w2d = weight.reshape(weight.shape[0], weight.shape[1])  # (Cout, Cin)
    z = jnp.einsum("nchw,oc->nohw", x_nchw.astype(jnp.float32), w2d)
    return (jax.nn.sigmoid(z) * x_nchw.astype(jnp.float32)).astype(x_nchw.dtype)


if __name__ == "__main__":
    key = jax.random.PRNGKey(0)
    kx, kw, kx2, kw2, kx3, kw3, kx4, kw4 = jax.random.split(key, 8)

    # Case 1: small C -> VPU/SMEM path, HW a 128-multiple -> no padding.
    N, C, H, W = 2, 4, 16, 16
    x = jax.random.normal(kx, (N, C, H, W), dtype=jnp.float32)
    weight = make_weight(kw, C, std=1.0)
    out = jax.block_until_ready(asym_swiglu_pallas(x, weight))
    ref = _reference(x, weight)
    assert out.shape == x.shape
    assert jnp.allclose(out, ref, atol=1e-5, rtol=1e-5)

    # Case 2: larger C, HW < 128 -> MXU path with full-extent lane block
    # (no padding, no slice).
    N2, C2, H2, W2 = 2, 128, 8, 8
    x2 = jax.random.normal(kx2, (N2, C2, H2, W2), dtype=jnp.float32)
    weight2 = make_weight(kw2, C2, std=1.0)
    out2 = jax.block_until_ready(asym_swiglu_pallas(x2, weight2))
    ref2 = _reference(x2, weight2)
    assert out2.shape == x2.shape
    assert jnp.allclose(out2, ref2, atol=2e-2, rtol=2e-2)

    # Case 3: force the 128-boundary padding fallback path (odd HW).
    N3, C3, H3, W3 = 2, 16, 10, 10
    x3 = jax.random.normal(kx3, (N3, C3, H3, W3), dtype=jnp.float32)
    weight3 = make_weight(kw3, C3, std=1.0)
    out3 = jax.block_until_ready(
        asym_swiglu_pallas(x3, weight3, full_lane_cap_bytes=0))
    ref3 = _reference(x3, weight3)
    assert out3.shape == x3.shape
    assert jnp.allclose(out3, ref3, atol=2e-2, rtol=2e-2)

    # Case 4: bf16 activations -> bf16 MXU weights + bf16 gate multiply.
    N4, C4, H4, W4 = 2, 32, 16, 8
    x4 = jax.random.normal(kx4, (N4, C4, H4, W4), dtype=jnp.bfloat16)
    weight4 = make_weight(kw4, C4, std=1.0)
    out4 = jax.block_until_ready(asym_swiglu_pallas(x4, weight4))
    ref4 = _reference(x4, weight4)
    assert out4.shape == x4.shape
    assert jnp.allclose(out4.astype(jnp.float32), ref4.astype(jnp.float32),
                        atol=5e-2, rtol=5e-2)

    print("KERNEL_OK")
</pallas_src>

<mosaic_0001>
module attributes {stable_mosaic.version = 11 : i64} {
  func.func @kernel(%arg0: i32, %arg1: i32, %arg2: memref<4x4xf32, #tpu.memory_space<smem>>, %arg3: memref<1x4x256xf32, #tpu.memory_space<vmem>>, %arg4: memref<1x4x256xf32, #tpu.memory_space<vmem>>) attributes {dimension_semantics = [#tpu.dimension_semantics<parallel>, #tpu.dimension_semantics<parallel>], iteration_bounds = array<i64: 2, 1>, scalar_prefetch = 0 : i64, scratch_operands = 0 : i64, tpu.core_type = #tpu.core_type<tc>, window_params = [{transform_indices = @transform_0, window_bounds = array<i64: 4, 4>}, {transform_indices = @transform_1, window_bounds = array<i64: 1, 4, 256>}, {transform_indices = @transform_2, window_bounds = array<i64: 1, 4, 256>}]} {
    %c0 = arith.constant 0 : index
    %c0_0 = arith.constant 0 : index
    %c0_1 = arith.constant 0 : index
    %0 = vector.load %arg3[%c0, %c0_0, %c0_1] : memref<1x4x256xf32, #tpu.memory_space<vmem>>, vector<1x4x256xf32>
    %c0_2 = arith.constant 0 : index
    %c0_3 = arith.constant 0 : index
    %1 = memref.load %arg2[%c0_2, %c0_3] : memref<4x4xf32, #tpu.memory_space<smem>>
    %2 = vector.extract_strided_slice %0 {offsets = [0, 0, 0], sizes = [1, 1, 256], strides = [1, 1, 1]} : vector<1x4x256xf32> to vector<1x1x256xf32>
    %3 = vector.broadcast %1 : f32 to vector<1x1x256xf32>
    %4 = arith.mulf %3, %2 : vector<1x1x256xf32>
    %c0_4 = arith.constant 0 : index
    %c1 = arith.constant 1 : index
    %5 = memref.load %arg2[%c0_4, %c1] : memref<4x4xf32, #tpu.memory_space<smem>>
    %6 = vector.extract_strided_slice %0 {offsets = [0, 1, 0], sizes = [1, 1, 256], strides = [1, 1, 1]} : vector<1x4x256xf32> to vector<1x1x256xf32>
    %7 = vector.broadcast %5 : f32 to vector<1x1x256xf32>
    %8 = arith.mulf %7, %6 : vector<1x1x256xf32>
    %9 = arith.addf %4, %8 : vector<1x1x256xf32>
    %c0_5 = arith.constant 0 : index
    %c2 = arith.constant 2 : index
    %10 = memref.load %arg2[%c0_5, %c2] : memref<4x4xf32, #tpu.memory_space<smem>>
    %11 = vector.extract_strided_slice %0 {offsets = [0, 2, 0], sizes = [1, 1, 256], strides = [1, 1, 1]} : vector<1x4x256xf32> to vector<1x1x256xf32>
    %12 = vector.broadcast %10 : f32 to vector<1x1x256xf32>
    %13 = arith.mulf %12, %11 : vector<1x1x256xf32>
    %14 = arith.addf %9, %13 : vector<1x1x256xf32>
    %c0_6 = arith.constant 0 : index
    %c3 = arith.constant 3 : index
    %15 = memref.load %arg2[%c0_6, %c3] : memref<4x4xf32, #tpu.memory_space<smem>>
    %16 = vector.extract_strided_slice %0 {offsets = [0, 3, 0], sizes = [1, 1, 256], strides = [1, 1, 1]} : vector<1x4x256xf32> to vector<1x1x256xf32>
    %17 = vector.broadcast %15 : f32 to vector<1x1x256xf32>
    %18 = arith.mulf %17, %16 : vector<1x1x256xf32>
    %19 = arith.addf %14, %18 : vector<1x1x256xf32>
    %20 = arith.negf %19 : vector<1x1x256xf32>
    %21 = math.exp %20 : vector<1x1x256xf32>
    %cst = arith.constant 1.000000e+00 : f32
    %22 = vector.broadcast %cst : f32 to vector<1x1x256xf32>
    %23 = arith.addf %22, %21 : vector<1x1x256xf32>
    %24 = arith.divf %22, %23 : vector<1x1x256xf32>
    %25 = vector.extract_strided_slice %0 {offsets = [0, 0, 0], sizes = [1, 1, 256], strides = [1, 1, 1]} : vector<1x4x256xf32> to vector<1x1x256xf32>
    %26 = arith.mulf %24, %25 : vector<1x1x256xf32>
    %c0_7 = arith.constant 0 : index
    %c0_8 = arith.constant 0 : index
    %c0_9 = arith.constant 0 : index
    %27 = vector.load %arg4[%c0_7, %c0_8, %c0_9] : memref<1x4x256xf32, #tpu.memory_space<vmem>>, vector<1x1x256xf32>
    tpu.vector_store %arg4[%c0_7, %c0_8, %c0_9], %26 {strides = array<i32>} : memref<1x4x256xf32, #tpu.memory_space<vmem>>, vector<1x1x256xf32>,
    %c1_10 = arith.constant 1 : index
    %c0_11 = arith.constant 0 : index
    %28 = memref.load %arg2[%c1_10, %c0_11] : memref<4x4xf32, #tpu.memory_space<smem>>
    %29 = vector.extract_strided_slice %0 {offsets = [0, 0, 0], sizes = [1, 1, 256], strides = [1, 1, 1]} : vector<1x4x256xf32> to vector<1x1x256xf32>
    %30 = vector.broadcast %28 : f32 to vector<1x1x256xf32>
    %31 = arith.mulf %30, %29 : vector<1x1x256xf32>
    %c1_12 = arith.constant 1 : index
    %c1_13 = arith.constant 1 : index
    %32 = memref.load %arg2[%c1_12, %c1_13] : memref<4x4xf32, #tpu.memory_space<smem>>
    %33 = vector.extract_strided_slice %0 {offsets = [0, 1, 0], sizes = [1, 1, 256], strides = [1, 1, 1]} : vector<1x4x256xf32> to vector<1x1x256xf32>
    %34 = vector.broadcast %32 : f32 to vector<1x1x256xf32>
    %35 = arith.mulf %34, %33 : vector<1x1x256xf32>
    %36 = arith.addf %31, %35 : vector<1x1x256xf32>
    %c1_14 = arith.constant 1 : index
    %c2_15 = arith.constant 2 : index
    %37 = memref.load %arg2[%c1_14, %c2_15] : memref<4x4xf32, #tpu.memory_space<smem>>
    %38 = vector.extract_strided_slice %0 {offsets = [0, 2, 0], sizes = [1, 1, 256], strides = [1, 1, 1]} : vector<1x4x256xf32> to vector<1x1x256xf32>
    %39 = vector.broadcast %37 : f32 to vector<1x1x256xf32>
    %40 = arith.mulf %39, %38 : vector<1x1x256xf32>
    %41 = arith.addf %36, %40 : vector<1x1x256xf32>
    %c1_16 = arith.constant 1 : index
    %c3_17 = arith.constant 3 : index
    %42 = memref.load %arg2[%c1_16, %c3_17] : memref<4x4xf32, #tpu.memory_space<smem>>
    %43 = vector.extract_strided_slice %0 {offsets = [0, 3, 0], sizes = [1, 1, 256], strides = [1, 1, 1]} : vector<1x4x256xf32> to vector<1x1x256xf32>
    %44 = vector.broadcast %42 : f32 to vector<1x1x256xf32>
    %45 = arith.mulf %44, %43 : vector<1x1x256xf32>
    %46 = arith.addf %41, %45 : vector<1x1x256xf32>
    %47 = arith.negf %46 : vector<1x1x256xf32>
    %48 = math.exp %47 : vector<1x1x256xf32>
    %cst_18 = arith.constant 1.000000e+00 : f32
    %49 = vector.broadcast %cst_18 : f32 to vector<1x1x256xf32>
    %50 = arith.addf %49, %48 : vector<1x1x256xf32>
    %51 = arith.divf %49, %50 : vector<1x1x256xf32>
    %52 = vector.extract_strided_slice %0 {offsets = [0, 1, 0], sizes = [1, 1, 256], strides = [1, 1, 1]} : vector<1x4x256xf32> to vector<1x1x256xf32>
    %53 = arith.mulf %51, %52 : vector<1x1x256xf32>
    %c0_19 = arith.constant 0 : index
    %c1_20 = arith.constant 1 : index
    %c0_21 = arith.constant 0 : index
    %54 = vector.load %arg4[%c0_19, %c1_20, %c0_21] : memref<1x4x256xf32, #tpu.memory_space<vmem>>, vector<1x1x256xf32>
    tpu.vector_store %arg4[%c0_19, %c1_20, %c0_21], %53 {strides = array<i32>} : memref<1x4x256xf32, #tpu.memory_space<vmem>>, vector<1x1x256xf32>,
    %c2_22 = arith.constant 2 : index
    %c0_23 = arith.constant 0 : index
    %55 = memref.load %arg2[%c2_22, %c0_23] : memref<4x4xf32, #tpu.memory_space<smem>>
    %56 = vector.extract_strided_slice %0 {offsets = [0, 0, 0], sizes = [1, 1, 256], strides = [1, 1, 1]} : vector<1x4x256xf32> to vector<1x1x256xf32>
    %57 = vector.broadcast %55 : f32 to vector<1x1x256xf32>
    %58 = arith.mulf %57, %56 : vector<1x1x256xf32>
    %c2_24 = arith.constant 2 : index
    %c1_25 = arith.constant 1 : index
    %59 = memref.load %arg2[%c2_24, %c1_25] : memref<4x4xf32, #tpu.memory_space<smem>>
    %60 = vector.extract_strided_slice %0 {offsets = [0, 1, 0], sizes = [1, 1, 256], strides = [1, 1, 1]} : vector<1x4x256xf32> to vector<1x1x256xf32>
    %61 = vector.broadcast %59 : f32 to vector<1x1x256xf32>
    %62 = arith.mulf %61, %60 : vector<1x1x256xf32>
    %63 = arith.addf %58, %62 : vector<1x1x256xf32>
    %c2_26 = arith.constant 2 : index
    %c2_27 = arith.constant 2 : index
    %64 = memref.load %arg2[%c2_26, %c2_27] : memref<4x4xf32, #tpu.memory_space<smem>>
    %65 = vector.extract_strided_slice %0 {offsets = [0, 2, 0], sizes = [1, 1, 256], strides = [1, 1, 1]} : vector<1x4x256xf32> to vector<1x1x256xf32>
    %66 = vector.broadcast %64 : f32 to vector<1x1x256xf32>
    %67 = arith.mulf %66, %65 : vector<1x1x256xf32>
    %68 = arith.addf %63, %67 : vector<1x1x256xf32>
    %c2_28 = arith.constant 2 : index
    %c3_29 = arith.constant 3 : index
    %69 = memref.load %arg2[%c2_28, %c3_29] : memref<4x4xf32, #tpu.memory_space<smem>>
    %70 = vector.extract_strided_slice %0 {offsets = [0, 3, 0], sizes = [1, 1, 256], strides = [1, 1, 1]} : vector<1x4x256xf32> to vector<1x1x256xf32>
    %71 = vector.broadcast %69 : f32 to vector<1x1x256xf32>
    %72 = arith.mulf %71, %70 : vector<1x1x256xf32>
    %73 = arith.addf %68, %72 : vector<1x1x256xf32>
    %74 = arith.negf %73 : vector<1x1x256xf32>
    %75 = math.exp %74 : vector<1x1x256xf32>
    %cst_30 = arith.constant 1.000000e+00 : f32
    %76 = vector.broadcast %cst_30 : f32 to vector<1x1x256xf32>
    %77 = arith.addf %76, %75 : vector<1x1x256xf32>
    %78 = arith.divf %76, %77 : vector<1x1x256xf32>
    %79 = vector.extract_strided_slice %0 {offsets = [0, 2, 0], sizes = [1, 1, 256], strides = [1, 1, 1]} : vector<1x4x256xf32> to vector<1x1x256xf32>
    %80 = arith.mulf %78, %79 : vector<1x1x256xf32>
    %c0_31 = arith.constant 0 : index
    %c2_32 = arith.constant 2 : index
    %c0_33 = arith.constant 0 : index
    %81 = vector.load %arg4[%c0_31, %c2_32, %c0_33] : memref<1x4x256xf32, #tpu.memory_space<vmem>>, vector<1x1x256xf32>
    tpu.vector_store %arg4[%c0_31, %c2_32, %c0_33], %80 {strides = array<i32>} : memref<1x4x256xf32, #tpu.memory_space<vmem>>, vector<1x1x256xf32>,
    %c3_34 = arith.constant 3 : index
    %c0_35 = arith.constant 0 : index
    %82 = memref.load %arg2[%c3_34, %c0_35] : memref<4x4xf32, #tpu.memory_space<smem>>
    %83 = vector.extract_strided_slice %0 {offsets = [0, 0, 0], sizes = [1, 1, 256], strides = [1, 1, 1]} : vector<1x4x256xf32> to vector<1x1x256xf32>
    %84 = vector.broadcast %82 : f32 to vector<1x1x256xf32>
    %85 = arith.mulf %84, %83 : vector<1x1x256xf32>
    %c3_36 = arith.constant 3 : index
    %c1_37 = arith.constant 1 : index
    %86 = memref.load %arg2[%c3_36, %c1_37] : memref<4x4xf32, #tpu.memory_space<smem>>
    %87 = vector.extract_strided_slice %0 {offsets = [0, 1, 0], sizes = [1, 1, 256], strides = [1, 1, 1]} : vector<1x4x256xf32> to vector<1x1x256xf32>
    %88 = vector.broadcast %86 : f32 to vector<1x1x256xf32>
    %89 = arith.mulf %88, %87 : vector<1x1x256xf32>
    %90 = arith.addf %85, %89 : vector<1x1x256xf32>
    %c3_38 = arith.constant 3 : index
    %c2_39 = arith.constant 2 : index
    %91 = memref.load %arg2[%c3_38, %c2_39] : memref<4x4xf32, #tpu.memory_space<smem>>
    %92 = vector.extract_strided_slice %0 {offsets = [0, 2, 0], sizes = [1, 1, 256], strides = [1, 1, 1]} : vector<1x4x256xf32> to vector<1x1x256xf32>
    %93 = vector.broadcast %91 : f32 to vector<1x1x256xf32>
    %94 = arith.mulf %93, %92 : vector<1x1x256xf32>
    %95 = arith.addf %90, %94 : vector<1x1x256xf32>
    %c3_40 = arith.constant 3 : index
    %c3_41 = arith.constant 3 : index
    %96 = memref.load %arg2[%c3_40, %c3_41] : memref<4x4xf32, #tpu.memory_space<smem>>
    %97 = vector.extract_strided_slice %0 {offsets = [0, 3, 0], sizes = [1, 1, 256], strides = [1, 1, 1]} : vector<1x4x256xf32> to vector<1x1x256xf32>
    %98 = vector.broadcast %96 : f32 to vector<1x1x256xf32>
    %99 = arith.mulf %98, %97 : vector<1x1x256xf32>
    %100 = arith.addf %95, %99 : vector<1x1x256xf32>
    %101 = arith.negf %100 : vector<1x1x256xf32>
    %102 = math.exp %101 : vector<1x1x256xf32>
    %cst_42 = arith.constant 1.000000e+00 : f32
    %103 = vector.broadcast %cst_42 : f32 to vector<1x1x256xf32>
    %104 = arith.addf %103, %102 : vector<1x1x256xf32>
    %105 = arith.divf %103, %104 : vector<1x1x256xf32>
    %106 = vector.extract_strided_slice %0 {offsets = [0, 3, 0], sizes = [1, 1, 256], strides = [1, 1, 1]} : vector<1x4x256xf32> to vector<1x1x256xf32>
    %107 = arith.mulf %105, %106 : vector<1x1x256xf32>
    %c0_43 = arith.constant 0 : index
    %c3_44 = arith.constant 3 : index
    %c0_45 = arith.constant 0 : index
    %108 = vector.load %arg4[%c0_43, %c3_44, %c0_45] : memref<1x4x256xf32, #tpu.memory_space<vmem>>, vector<1x1x256xf32>
    tpu.vector_store %arg4[%c0_43, %c3_44, %c0_45], %107 {strides = array<i32>} : memref<1x4x256xf32, #tpu.memory_space<vmem>>, vector<1x1x256xf32>,
    return
  }
  func.func @transform_0(%arg0: i32, %arg1: i32) -> (i32, i32) {
    %c0_i32 = arith.constant 0 : i32
    %c0_i32_0 = arith.constant 0 : i32
    %c0_i32_1 = arith.constant 0 : i32
    return %c0_i32, %c0_i32_0 : i32, i32
  }
  func.func @transform_1(%arg0: i32, %arg1: i32) -> (i32, i32, i32) {
    %c0_i32 = arith.constant 0 : i32
    %c0_i32_0 = arith.constant 0 : i32
    return %arg0, %c0_i32, %arg1 : i32, i32, i32
  }
  func.func @transform_2(%arg0: i32, %arg1: i32) -> (i32, i32, i32) {
    %c0_i32 = arith.constant 0 : i32
    %c0_i32_0 = arith.constant 0 : i32
    return %arg0, %c0_i32, %arg1 : i32, i32, i32
  }
}

</mosaic_0001>

<llo_original>
// kernel: tpu_custom_call.1
$region0: #{tpu_custom_call.1}
  #allocation0 [shape = 'u32[]', space=smem, size = 0x4, offset = 0x4, fixed_abs, tag = 'smem constant byte address 0x4 - core index']
  #allocation1 [shape = 'u32[144,128]{1,0:T(1,128)}', space=vmem, size = 0x12000, scoped, tag = 'internal scratch']
  %s0 = inlined_call_operand.hbm [shape: f32[4,4], index: 0, kind: input, shape index: {}]
  %s1 = inlined_call_operand.hbm [shape: f32[2,4,256], index: 1, kind: input, shape index: {}]
  %s2 = inlined_call_operand.hbm [shape: f32[2,4,256], index: 2, kind: output, shape index: {}]
  %s3 = sld [smem:[#allocation0]]
  $region49: #{tpu_custom_call.1} parent=0
    _
  %s5 = ssub.s32 1, %s3
  %s6 = scalar_select 0, %s5, %s3
  $region1: #{tpu_custom_call.1} parent=0
    #allocation2 [shape = 'u8[2048]{0}', space=smem, size = 0x800, scoped, tag = 'input window, operand 0, single buffered']
    #allocation3 [shape = 's32[2]{0}', space=sflag, size = 0x8, scoped, tag = 'scoped memory for tpu_custom_call.1']
    #allocation4 [shape = 's32[2]{0}', space=sflag, size = 0x8, scoped, tag = 'scoped memory for tpu_custom_call.1']
    #allocation5 [shape = 's32[2]{0}', space=sflag, size = 0x8, scoped, tag = 'scoped memory for tpu_custom_call.1']
    #allocation6 [shape = 'u8[8192]{0}', space=vmem, size = 0x2000, scoped, tag = 'input window, operand 1']
    #allocation7 [shape = 'u8[8192]{0}', space=vmem, size = 0x2000, scoped, tag = 'output window, operand 0']
    %7 = vsyncpa [#allocation5], 0
    %8 = vsyncpa [#allocation3], 0
    %s9 = scalar_lea.sflag [#allocation3], 1
    %10 = vsyncpa %s9, 0
    %11 = vsyncpa [#allocation4], 0
    %s12 = scalar_lea.sflag [#allocation4], 1
    %13 = vsyncpa %s12, 0
    loop: start=0, step=1, limit=4
    $region2: #{tpu_custom_call.1} parent=1 // loop_pre_header
      _
    $region3: #{tpu_custom_call.1} parent=1 // loop_header
      %s15 = sphi 0, %s19
      %p16 = scmp.ge.s32.totalorder %s15, 4
      %s22 = sphi 0, %s34
      %s23 = sphi 0, %s30
      %s24 = sphi 0, %s22
      %s25 = sphi 0, %s23
      %s26 = sphi 0, %s24
      %s27 = sphi 0, %s25
      %s35 = sphi 0, %s35
      %s37 = sphi 0, %s35
      %s38 = sphi 0, %s37
      %s52 = sphi 0, %s38
      %s60 = sphi 0, %s62
      %s63 = sphi 0, %s60
      %s64 = sphi 0, %s63
      %s80 = sphi 0, %s64
      %s88 = sphi 0, %s90
      %s91 = sphi 0, %s88
      %s92 = sphi 0, %s91
      %s108 = sphi 0, %s92
    $region4: #{tpu_custom_call.1} parent=1 // loop_header_branch
      %18 = sbr.rel (%p16) target = $region8
    $region5: #{tpu_custom_call.1} parent=1 // loop_body
      %s20 = ssub.s32 %s15, 1
      %s21 = ssub.s32 %s15, 2
      %s28 = sadd.s32 1, %s23
      %p29 = scmp.ge.s32.totalorder %s28, 1
      %s30 = scalar_select %p29, 0, %s28
      %s31 = sadd.s32 1, %s22
      %s32 = scalar_select %p29, %s31, %s22
      %p33 = scmp.ge.s32.totalorder %s32, 2
      %s34 = scalar_select %p33, 0, %s32
      %s36 = sadd.s32 %s35, 1
      %p39 = scmp.eq.s32.totalorder %s15, 1
      %p40 = scmp.ne.s32.totalorder %s35, %s37
      %p41 = scmp.eq.s32.totalorder %s15, 0
      %p42 = por %p40, %p41
      %p43 = scmp.ne.s32.totalorder %s35, %s37
      %p44 = scmp.eq.s32.totalorder %s20, 1
      %p45 = por %p43, %p44
      %p46 = scmp.ne.s32.totalorder %s37, %s38
      %p47 = scmp.eq.s32.totalorder %s20, 0
      %p48 = por %p46, %p47
      %p49 = scmp.ne.s32.totalorder %s37, %s38
      %p50 = scmp.eq.s32.totalorder %s21, 1
      %p51 = por %p49, %p50
      %p53 = scmp.ne.s32.totalorder %s38, %s52
      %p54 = scmp.eq.s32.totalorder %s21, 0
      %p55 = por %p53, %p54
      %s56 = ssub.s32 %s22, %s34
      %s57 = ssub.s32 %s23, %s30
      %s58 = sor.u32 %s56, %s57
      %p59 = scmp.eq.s32.totalorder %s58, 0
      %s61 = sadd.s32 %s60, 1
      %s62 = scalar_select %p59, %s60, %s61
      %p65 = pneg %p59
      %p66 = scmp.eq.s32.totalorder %s15, 1
      %p67 = por %p65, %p66
      %p68 = scmp.ne.s32.totalorder %s60, %s63
      %p69 = scmp.eq.s32.totalorder %s15, 0
      %p70 = por %p68, %p69
      %p71 = scmp.ne.s32.totalorder %s60, %s63
      %p72 = scmp.eq.s32.totalorder %s20, 1
      %p73 = por %p71, %p72
      %p74 = scmp.ne.s32.totalorder %s63, %s64
      %p75 = scmp.eq.s32.totalorder %s20, 0
      %p76 = por %p74, %p75
      %p77 = scmp.ne.s32.totalorder %s63, %s64
      %p78 = scmp.eq.s32.totalorder %s21, 1
      %p79 = por %p77, %p78
      %p81 = scmp.ne.s32.totalorder %s64, %s80
      %p82 = scmp.eq.s32.totalorder %s21, 0
      %p83 = por %p81, %p82
      %s84 = ssub.s32 %s22, %s34
      %s85 = ssub.s32 %s23, %s30
      %s86 = sor.u32 %s84, %s85
      %p87 = scmp.eq.s32.totalorder %s86, 0
      %s89 = sadd.s32 %s88, 1
      %s90 = scalar_select %p87, %s88, %s89
      %p93 = pneg %p87
      %p94 = scmp.eq.s32.totalorder %s15, 1
      %p95 = por %p93, %p94
      %p96 = scmp.ne.s32.totalorder %s88, %s91
      %p97 = scmp.eq.s32.totalorder %s15, 0
      %p98 = por %p96, %p97
      %p99 = scmp.ne.s32.totalorder %s88, %s91
      %p100 = scmp.eq.s32.totalorder %s20, 1
      %p101 = por %p99, %p100
      %p102 = scmp.ne.s32.totalorder %s91, %s92
      %p103 = scmp.eq.s32.totalorder %s20, 0
      %p104 = por %p102, %p103
      %p105 = scmp.ne.s32.totalorder %s91, %s92
      %p106 = scmp.eq.s32.totalorder %s21, 1
      %p107 = por %p105, %p106
      %p109 = scmp.ne.s32.totalorder %s92, %s108
      %p110 = scmp.eq.s32.totalorder %s21, 0
      %p111 = por %p109, %p110
      %p112 = scmp.le.s32.totalorder 1, %s15
      %p113 = scmp.lt.s32.totalorder %s15, 3
      %p114 = pnand %p112, %p113
      %p115 = pneg %p114
      // Predicated region
      $region9: #{tpu_custom_call.1} parent=5 // pred_check
        _
      $region10: #{tpu_custom_call.1} parent=5 // pred_check_branch
        %117 = sbr.rel (%p114) target = $region12
      $region11: #{tpu_custom_call.1} parent=5 // pred_region
        %s118 = ssub.s32 %s15, 1
        // Predicated region
        $region13: #{tpu_custom_call.1} parent=11 // pred_check
          %p119 = pneg %p48
        $region14: #{tpu_custom_call.1} parent=11 // pred_check_branch
          %121 = sbr.rel (%p119) target = $region16
        $region15: #{tpu_custom_call.1} parent=11 // pred_region
          %s123 = ssub.s32 64, 64
          %124 = vsyncadd [#allocation5], %s123
          %127 = dma.hbm_to_smem %s0, 64, [#allocation2], [#allocation5]
        $region16: #{tpu_custom_call.1} parent=11 // pred_fallthru
          _
      $region12: #{tpu_custom_call.1} parent=5 // pred_fallthru
        _
      %p128 = scmp.lt.s32.totalorder %s15, 2
      // Predicated region
      $region17: #{tpu_custom_call.1} parent=5 // pred_check
        %p129 = pneg %p128
      $region18: #{tpu_custom_call.1} parent=5 // pred_check_branch
        %131 = sbr.rel (%p129) target = $region20
      $region19: #{tpu_custom_call.1} parent=5 // pred_region
        // Predicated region
        $region21: #{tpu_custom_call.1} parent=19 // pred_check
          %p132 = pneg %p70
        $region22: #{tpu_custom_call.1} parent=19 // pred_check_branch
          %134 = sbr.rel (%p132) target = $region24
        $region23: #{tpu_custom_call.1} parent=19 // pred_region
          %s135 = sand.u32 %s60, 1
          %s136 = scalar_lea.sflag [#allocation3], %s135
          %s137 = sand.u32 %s60, 1
          %s138 = smul.addr %s137, 8
          %s139 = scalar_lea.vmem [#allocation6], %s138
          %s140 = smul.u32 2, %s23
          %s142 = ssub.s32 128, 128
          %143 = vsyncadd %s136, %s142
          %s144 = smul.addr %s22, 2
          %s145 = sadd.s32 %s140, %s144
          %s146 = smul.addr %s145, 64
          %s147 = scalar_lea.hbm %s1, %s146
          %s149 = sshll.u32 %s139, 4
          %s150 = int_to_ptr.vmem [resolvable:$true] %s149
          %152 = dma.hbm_to_vmem [thread:$0]  %s147, 128, %s150, %s136
        $region24: #{tpu_custom_call.1} parent=19 // pred_fallthru
          _
      $region20: #{tpu_custom_call.1} parent=5 // pred_fallthru
        _
      %p153 = scmp.le.s32.totalorder 1, %s15
      %p154 = scmp.lt.s32.totalorder %s15, 3
      %p155 = pnand %p153, %p154
      %p156 = pneg %p155
      // Predicated region
      $region25: #{tpu_custom_call.1} parent=5 // pred_check
        _
      $region26: #{tpu_custom_call.1} parent=5 // pred_check_branch
        %158 = sbr.rel (%p155) target = $region28
      $region27: #{tpu_custom_call.1} parent=5 // pred_region
        %s159 = ssub.s32 %s15, 1
        // Predicated region
        $region29: #{tpu_custom_call.1} parent=27 // pred_check
          %p160 = pneg %p48
        $region30: #{tpu_custom_call.1} parent=27 // pred_check_branch
          %162 = sbr.rel (%p160) target = $region32
        $region31: #{tpu_custom_call.1} parent=27 // pred_region
          %163 = dma.done [#allocation5], 64
        $region32: #{tpu_custom_call.1} parent=27 // pred_fallthru
          _
        %s164 = sand.u32 %s63, 1
        %s165 = scalar_lea.sflag [#allocation3], %s164
        %s166 = sand.u32 %s63, 1
        %s167 = smul.addr %s166, 8
        %s168 = scalar_lea.vmem [#allocation6], %s167
        // Predicated region
        $region33: #{tpu_custom_call.1} parent=27 // pred_check
          %p169 = pneg %p76
        $region34: #{tpu_custom_call.1} parent=27 // pred_check_branch
          %171 = sbr.rel (%p169) target = $region36
        $region35: #{tpu_custom_call.1} parent=27 // pred_region
          %172 = dma.done %s165, 128
        $region36: #{tpu_custom_call.1} parent=27 // pred_fallthru
          _
        %173 = sfence
        %p174 = pneg %p48
        %p175 = pneg %p45
        %s176 = sand.u32 %s63, 1
        %s177 = scalar_lea.sflag [#allocation3], %s176
        %s178 = sand.u32 %s63, 1
        %s179 = smul.addr %s178, 8
        %s180 = scalar_lea.vmem [#allocation6], %s179
        %p181 = pneg %p76
        %p182 = pneg %p73
        %p183 = pneg %p104
        %p184 = pneg %p101
        %s185 = sand.u32 %s91, 1
        %s186 = scalar_lea.sflag [#allocation4], %s185
        %s187 = sand.u32 %s91, 1
        %s188 = smul.addr %s187, 8
        %s189 = scalar_lea.vmem [#allocation7], %s188
        %s190 = smul.u32 2, %s25
        %s191 = smul.u32 2, %s25
        %v192 = vld [vmem:[%s168] sm:$0xff]
        %s193 = sld [smem:[#allocation2]]
        %v194 = vstv %s193
        %v195 = vmul.f32 %v194, %v192
        %s196 = sld [smem:[#allocation2 + $0x1]]
        %v197 = vstv %s196
        %v198 = vmul.f32 %v197, %v192
        %v200 = vrot.slane %v198, 5
        %v201 = vrot.slane %v200, 4
        %v203 = vadd.f32 %v195, %v201
        %s204 = sld [smem:[#allocation2 + $0x2]]
        %v205 = vstv %s204
        %v206 = vmul.f32 %v205, %v192
        %v208 = vrot.slane %v206, 6
        %v209 = vrot.slane %v208, 4
        %v211 = vadd.f32 %v203, %v209
        %s212 = sld [smem:[#allocation2 + $0x3]]
        %v213 = vstv %s212
        %v214 = vmul.f32 %v213, %v192
        %v216 = vrot.slane %v214, 7
        %v217 = vrot.slane %v216, 4
        %v219 = vadd.f32 %v211, %v217
        %v220 = vxor.u32 %v219, 2147483648
        %v221 = vmul.f32 %v220, 1.442695
        %v222 = vpow.pop %v221
        %v223 = vadd.f32 %v222, 1.0
        %v224 = vrcp.pop %v223
        %v225 = vmul.f32 1.0, %v224
        %v226 = vmul.f32 %v225, %v192
        %v229 = vunpack.c.l.s4 1966171168
        %v230 = vunpack.c.0.s8 %v229
        %v231 = vlaneseq
        %v232 = vshrl.u32 %v231, 7
        %v233 = vsub.s32 %v230, %v232
        %v234 = vrot.slane %v226, %v233
        %v236 = vunpack.c.l.s4 1966171168
        %v237 = vunpack.c.0.s8 %v236
        %v238 = vlaneseq
        %v239 = vshrl.u32 %v238, 7
        %v240 = vsub.s32 %v237, %v239
        %v241 = vrot.slane %v234, %v240
        %v243 = vlaneseq
        %vm244 = vcmp.ge.s32.totalorder %v243, 0
        %vm245 = vcmp.lt.s32.totalorder %v243, 256
        %vm246 = vmand %vm244, %vm245
        %247 = vst.msk [vmem:[%s189] ss:$4 sm:$0x3] %vm246, %v241
        %s248 = sld [smem:[#allocation2 + $0x80]]
        %v249 = vstv %s248
        %v250 = vmul.f32 %v249, %v192
        %s251 = sld [smem:[#allocation2 + $0x81]]
        %v252 = vstv %s251
        %v253 = vmul.f32 %v252, %v192
        %v255 = vrot.slane %v253, 5
        %v256 = vrot.slane %v255, 4
        %v258 = vadd.f32 %v250, %v256
        %s259 = sld [smem:[#allocation2 + $0x82]]
        %v260 = vstv %s259
        %v261 = vmul.f32 %v260, %v192
        %v263 = vrot.slane %v261, 6
        %v264 = vrot.slane %v263, 4
        %v266 = vadd.f32 %v258, %v264
        %s267 = sld [smem:[#allocation2 + $0x83]]
        %v268 = vstv %s267
        %v269 = vmul.f32 %v268, %v192
        %v271 = vrot.slane %v269, 7
        %v272 = vrot.slane %v271, 4
        %v274 = vadd.f32 %v266, %v272
        %v275 = vxor.u32 %v274, 2147483648
        %v276 = vmul.f32 %v275, 1.442695
        %v277 = vpow.pop %v276
        %v278 = vadd.f32 %v277, 1.0
        %v279 = vrcp.pop %v278
        %v280 = vmul.f32 1.0, %v279
        %v282 = vrot.slane %v192, 5
        %v283 = vrot.slane %v282, 4
        %v285 = vmul.f32 %v280, %v283
        %v288 = vunpack.c.l.s4 1966171168
        %v289 = vunpack.c.0.s8 %v288
        %v290 = vlaneseq
        %v291 = vshrl.u32 %v290, 7
        %v292 = vsub.s32 %v289, %v291
        %v293 = vrot.slane %v285, %v292
        %v295 = vunpack.c.l.s4 1966171168
        %v296 = vunpack.c.0.s8 %v295
        %v297 = vlaneseq
        %v298 = vshrl.u32 %v297, 7
        %v299 = vsub.s32 %v296, %v298
        %v300 = vrot.slane %v293, %v299
        %s302 = scalar_lea.vmem %s189, 1 [#allocation7]
        %303 = vst.msk [vmem:[%s302] ss:$4 sm:$0x3] %vm246, %v300
        %s304 = sld [smem:[#allocation2 + $0x100]]
        %v305 = vstv %s304
        %v306 = vmul.f32 %v305, %v192
        %s307 = sld [smem:[#allocation2 + $0x101]]
        %v308 = vstv %s307
        %v309 = vmul.f32 %v308, %v192
        %v311 = vrot.slane %v309, 5
        %v312 = vrot.slane %v311, 4
        %v314 = vadd.f32 %v306, %v312
        %s315 = sld [smem:[#allocation2 + $0x102]]
        %v316 = vstv %s315
        %v317 = vmul.f32 %v316, %v192
        %v319 = vrot.slane %v317, 6
        %v320 = vrot.slane %v319, 4
        %v322 = vadd.f32 %v314, %v320
        %s323 = sld [smem:[#allocation2 + $0x103]]
        %v324 = vstv %s323
        %v325 = vmul.f32 %v324, %v192
        %v327 = vrot.slane %v325, 7
        %v328 = vrot.slane %v327, 4
        %v330 = vadd.f32 %v322, %v328
        %v331 = vxor.u32 %v330, 2147483648
        %v332 = vmul.f32 %v331, 1.442695
        %v333 = vpow.pop %v332
        %v334 = vadd.f32 %v333, 1.0
        %v335 = vrcp.pop %v334
        %v336 = vmul.f32 1.0, %v335
        %v337 = vrot.slane %v192, 6
        %v338 = vrot.slane %v337, 4
        %v340 = vmul.f32 %v336, %v338
        %v343 = vunpack.c.l.s4 1966171168
        %v344 = vunpack.c.0.s8 %v343
        %v345 = vlaneseq
        %v346 = vshrl.u32 %v345, 7
        %v347 = vsub.s32 %v344, %v346
        %v348 = vrot.slane %v340, %v347
        %v350 = vunpack.c.l.s4 1966171168
        %v351 = vunpack.c.0.s8 %v350
        %v352 = vlaneseq
        %v353 = vshrl.u32 %v352, 7
        %v354 = vsub.s32 %v351, %v353
        %v355 = vrot.slane %v348, %v354
        %s357 = scalar_lea.vmem %s189, 2 [#allocation7]
        %358 = vst.msk [vmem:[%s357] ss:$4 sm:$0x3] %vm246, %v355
        %s359 = sld [smem:[#allocation2 + $0x180]]
        %v360 = vstv %s359
        %v361 = vmul.f32 %v360, %v192
        %s362 = sld [smem:[#allocation2 + $0x181]]
        %v363 = vstv %s362
        %v364 = vmul.f32 %v363, %v192
        %v366 = vrot.slane %v364, 5
        %v367 = vrot.slane %v366, 4
        %v369 = vadd.f32 %v361, %v367
        %s370 = sld [smem:[#allocation2 + $0x182]]
        %v371 = vstv %s370
        %v372 = vmul.f32 %v371, %v192
        %v374 = vrot.slane %v372, 6
        %v375 = vrot.slane %v374, 4
        %v377 = vadd.f32 %v369, %v375
        %s378 = sld [smem:[#allocation2 + $0x183]]
        %v379 = vstv %s378
        %v380 = vmul.f32 %v379, %v192
        %v382 = vrot.slane %v380, 7
        %v383 = vrot.slane %v382, 4
        %v385 = vadd.f32 %v377, %v383
        %v386 = vxor.u32 %v385, 2147483648
        %v387 = vmul.f32 %v386, 1.442695
        %v388 = vpow.pop %v387
        %v389 = vadd.f32 %v388, 1.0
        %v390 = vrcp.pop %v389
        %v391 = vmul.f32 1.0, %v390
        %v392 = vrot.slane %v192, 7
        %v393 = vrot.slane %v392, 4
        %v395 = vmul.f32 %v391, %v393
        %v398 = vunpack.c.l.s4 1966171168
        %v399 = vunpack.c.0.s8 %v398
        %v400 = vlaneseq
        %v401 = vshrl.u32 %v400, 7
        %v402 = vsub.s32 %v399, %v401
        %v403 = vrot.slane %v395, %v402
        %v405 = vunpack.c.l.s4 1966171168
        %v406 = vunpack.c.0.s8 %v405
        %v407 = vlaneseq
        %v408 = vshrl.u32 %v407, 7
        %v409 = vsub.s32 %v406, %v408
        %v410 = vrot.slane %v403, %v409
        %s412 = scalar_lea.vmem %s189, 3 [#allocation7]
        %413 = vst.msk [vmem:[%s412] ss:$4 sm:$0x3] %vm246, %v410
        %s414 = sand.u32 %s91, 1
        %s415 = scalar_lea.sflag [#allocation4], %s414
        %s416 = sand.u32 %s91, 1
        %s417 = smul.addr %s416, 8
        %s418 = scalar_lea.vmem [#allocation7], %s417
        // Predicated region
        $region37: #{tpu_custom_call.1} parent=27 // pred_check
          %p419 = pneg %p101
        $region38: #{tpu_custom_call.1} parent=27 // pred_check_branch
          %421 = sbr.rel (%p419) target = $region40
        $region39: #{tpu_custom_call.1} parent=27 // pred_region
          %s422 = smul.u32 2, %s25
          %s424 = ssub.s32 128, 128
          %425 = vsyncadd %s415, %s424
          %s426 = smul.addr %s24, 2
          %s427 = sadd.s32 %s422, %s426
          %s428 = smul.addr %s427, 64
          %s429 = scalar_lea.hbm %s2, %s428
          %s431 = sshll.u32 %s418, 4
          %s432 = int_to_ptr.vmem [resolvable:$true] %s431
          %434 = dma.vmem_to_hbm [thread:$0]  %s432, 128, %s429, %s415
        $region40: #{tpu_custom_call.1} parent=27 // pred_fallthru
          _
      $region28: #{tpu_custom_call.1} parent=5 // pred_fallthru
        _
      %p435 = scmp.le.s32.totalorder 2, %s15
      // Predicated region
      $region41: #{tpu_custom_call.1} parent=5 // pred_check
        %p436 = pneg %p435
      $region42: #{tpu_custom_call.1} parent=5 // pred_check_branch
        %438 = sbr.rel (%p436) target = $region44
      $region43: #{tpu_custom_call.1} parent=5 // pred_region
        %s439 = ssub.s32 %s15, 2
        // Predicated region
        $region45: #{tpu_custom_call.1} parent=43 // pred_check
          %p440 = pneg %p107
        $region46: #{tpu_custom_call.1} parent=43 // pred_check_branch
          %442 = sbr.rel (%p440) target = $region48
        $region47: #{tpu_custom_call.1} parent=43 // pred_region
          %s443 = sand.u32 %s92, 1
          %s444 = scalar_lea.sflag [#allocation4], %s443
          %s445 = sand.u32 %s92, 1
          %s446 = smul.addr %s445, 8
          %s447 = scalar_lea.vmem [#allocation7], %s446
          %448 = dma.done %s444, 128
        $region48: #{tpu_custom_call.1} parent=43 // pred_fallthru
          _
      $region44: #{tpu_custom_call.1} parent=5 // pred_fallthru
        _
    $region6: #{tpu_custom_call.1} parent=1 // loop_footer
      %s19 = sadd.s32 1, %s15
    $region7: #{tpu_custom_call.1} parent=1 // loop_footer_branch
      %14 = sbr.rel target = $region3
    $region8: #{tpu_custom_call.1} parent=1 // loop_exit
      _
    %449 = vsyncpa [#allocation3], 1
    %s450 = scalar_lea.sflag [#allocation3], 1
    %451 = vsyncpa %s450, 1
    %452 = vsyncpa [#allocation4], 1
    %s453 = scalar_lea.sflag [#allocation4], 1
    %454 = vsyncpa %s453, 1
    %455 = vsyncpa [#allocation5], 1
    %s456 = scalar_lea.sflag [#allocation5], 1
    %457 = vsyncpa %s456, 1

</llo_original>
